<compile_context>
chip_gen: v5e
topology: v5e:2x2
jax: 0.10.0
libtpu: 0.0.40
codegen_flags: <defaults>
</compile_context>

<pallas_src>
import jax
import jax.numpy as jnp
from jax.experimental import pallas as pl
from jax.experimental.pallas import tpu as pltpu

LANES = 128


def _scaled_sigmoid_kernel(scale, x_ref, o_ref):
    # Elementwise: exp -> EUP slot; exact divide is hidden under the DMA.
    x = x_ref[...].astype(jnp.float32)
    o_ref[...] = (1.0 / (1.0 + jnp.exp(-scale * x))).astype(o_ref.dtype)


def _jax_scaled_sigmoid(x, scale, out_dtype):
    xf = x.astype(jnp.float32)
    return (1.0 / (1.0 + jnp.exp(-scale * xf))).astype(out_dtype)


def _round_up(a, b):
    return ((a + b - 1) // b) * b


def _pick_lanes(n):
    # Widest lane dim (multiple of 128) that divides n -> zero-copy reshape.
    for w in (1024, 512, 256, 128):
        if n % w == 0:
            return w
    return LANES  # unreachable when n % 128 == 0


def scaled_sigmoid(x, scale=2.0, block_bytes=2 << 20, min_pallas_elements=65536):
    """Elementwise scaled sigmoid. Pallas for large 128-aligned float inputs,
    plain JAX otherwise (where XLA's fused elementwise is already at roofline)."""
    scale = float(scale)  # Python constant, baked at trace time

    # Integer/bool inputs: torch promotes through exp to float; mirror that.
    if not jnp.issubdtype(x.dtype, jnp.floating):
        return _jax_scaled_sigmoid(x, scale, jnp.float32)

    n = x.size
    if n < min_pallas_elements or n % LANES != 0:
        # Small or ragged total size: plain JAX (no pad/slice/concat copies,
        # no kernel-launch overhead).
        return _jax_scaled_sigmoid(x, scale, x.dtype)

    # ---- Pallas path: lane-dense (rows, W) slab, zero-copy reshape. ----
    w = _pick_lanes(n)
    rows = n // w
    itemsize = jnp.dtype(x.dtype).itemsize
    sub = {4: 8, 2: 16, 1: 32}.get(itemsize, 8)  # min sublane multiple per dtype

    # ~block_bytes per buffer, rounded down to a legal sublane multiple.
    cap = max(sub, (block_bytes // (w * itemsize)) // sub * sub)
    tr = min(rows, cap)
    grid = pl.cdiv(rows, tr)

    # Small odd grids: rebalance to an even block count so v7x's two
    # TensorCores share the parallel axis evenly (neutral on v5e/v6e).
    if grid <= 8 and grid % 2 == 1 and rows >= 2 * sub:
        tr = min(tr, _round_up(pl.cdiv(rows, grid + 1), sub))
        grid = pl.cdiv(rows, tr)

    x2d = x.reshape(rows, w)  # contiguous -> free reshape

    out2d = pl.pallas_call(
        lambda x_ref, o_ref: _scaled_sigmoid_kernel(scale, x_ref, o_ref),
        out_shape=jax.ShapeDtypeStruct((rows, w), x.dtype),
        grid_spec=pltpu.PrefetchScalarGridSpec(
            num_scalar_prefetch=0,
            grid=(grid,),
            in_specs=[pl.BlockSpec((tr, w), lambda i: (i, 0))],
            out_specs=pl.BlockSpec((tr, w), lambda i: (i, 0)),
        ),
        compiler_params=pltpu.CompilerParams(
            dimension_semantics=("parallel",),
        ),
    )(x2d)

    return out2d.reshape(x.shape)


if __name__ == "__main__":
    scale = 2.0
    key = jax.random.PRNGKey(0)
    k1, k2, k3, k4 = jax.random.split(key, 4)

    def ref(x):
        xf = x.astype(jnp.float32)
        return (1.0 / (1.0 + jnp.exp(-scale * xf))).astype(x.dtype)

    # 1) Pallas path, lane-dense W=1024 slab (65536 f32 elements, grid of 2).
    xa = jax.random.normal(k1, (2, 8, 64, 64), dtype=jnp.float32)
    ya = jax.block_until_ready(scaled_sigmoid(xa, scale=scale))
    assert ya.shape == xa.shape and ya.dtype == xa.dtype
    assert jnp.allclose(ya, ref(xa), atol=1e-6, rtol=1e-6)

    # 2) Pallas path, 128-aligned but not 1024-aligned -> adaptive W=512 slab.
    xb = jax.random.normal(k2, (257, 512), dtype=jnp.float32)
    yb = jax.block_until_ready(scaled_sigmoid(xb, scale=scale))
    assert yb.shape == xb.shape and yb.dtype == xb.dtype
    assert jnp.allclose(yb, ref(xb), atol=1e-6, rtol=1e-6)

    # 3) Pallas path, bf16 input (dtype-aware 16-row sublane rounding).
    xc = jax.random.normal(k3, (2, 8, 64, 64), dtype=jnp.bfloat16)
    yc = jax.block_until_ready(scaled_sigmoid(xc, scale=scale))
    assert yc.shape == xc.shape and yc.dtype == jnp.bfloat16
    assert jnp.allclose(yc.astype(jnp.float32), ref(xc).astype(jnp.float32),
                        atol=2e-2, rtol=2e-2)

    # 4) Small NCHW input typical of the module's use: plain-JAX fallback path.
    xd = jax.random.normal(k4, (2, 4, 16, 16), dtype=jnp.float32)
    yd = jax.block_until_ready(scaled_sigmoid(xd, scale=scale))
    assert yd.shape == xd.shape and yd.dtype == xd.dtype
    assert jnp.allclose(yd, ref(xd), atol=1e-6, rtol=1e-6)

    print("KERNEL_OK")
</pallas_src>

<mosaic_0001>
module attributes {stable_mosaic.version = 11 : i64} {
  func.func @_lambda_(%arg0: i32, %arg1: memref<32x1024xf32, #tpu.memory_space<vmem>>, %arg2: memref<32x1024xf32, #tpu.memory_space<vmem>>) attributes {dimension_semantics = [#tpu.dimension_semantics<parallel>], iteration_bounds = array<i64: 2>, scalar_prefetch = 0 : i64, scratch_operands = 0 : i64, tpu.core_type = #tpu.core_type<tc>, window_params = [{transform_indices = @transform_0, window_bounds = array<i64: 32, 1024>}, {transform_indices = @transform_1, window_bounds = array<i64: 32, 1024>}]} {
    %c0 = arith.constant 0 : index
    %c0_0 = arith.constant 0 : index
    %0 = vector.load %arg1[%c0, %c0_0] : memref<32x1024xf32, #tpu.memory_space<vmem>>, vector<32x1024xf32>
    %cst = arith.constant -2.000000e+00 : f32
    %1 = vector.broadcast %cst : f32 to vector<32x1024xf32>
    %2 = arith.mulf %1, %0 : vector<32x1024xf32>
    %3 = math.exp %2 : vector<32x1024xf32>
    %cst_1 = arith.constant 1.000000e+00 : f32
    %4 = vector.broadcast %cst_1 : f32 to vector<32x1024xf32>
    %5 = arith.addf %4, %3 : vector<32x1024xf32>
    %cst_2 = arith.constant 1.000000e+00 : f32
    %6 = vector.broadcast %cst_2 : f32 to vector<32x1024xf32>
    %7 = arith.divf %6, %5 : vector<32x1024xf32>
    %c0_3 = arith.constant 0 : index
    %c0_4 = arith.constant 0 : index
    %8 = vector.load %arg2[%c0_3, %c0_4] : memref<32x1024xf32, #tpu.memory_space<vmem>>, vector<32x1024xf32>
    tpu.vector_store %arg2[%c0_3, %c0_4], %7 {strides = array<i32>} : memref<32x1024xf32, #tpu.memory_space<vmem>>, vector<32x1024xf32>,
    return
  }
  func.func @transform_0(%arg0: i32) -> (i32, i32) {
    %c0_i32 = arith.constant 0 : i32
    %c0_i32_0 = arith.constant 0 : i32
    return %arg0, %c0_i32 : i32, i32
  }
  func.func @transform_1(%arg0: i32) -> (i32, i32) {
    %c0_i32 = arith.constant 0 : i32
    %c0_i32_0 = arith.constant 0 : i32
    return %arg0, %c0_i32 : i32, i32
  }
}

</mosaic_0001>

<llo_original>
// kernel: tpu_custom_call.1
$region0: #{tpu_custom_call.1}
  #allocation0 [shape = 'u32[]', space=smem, size = 0x4, offset = 0x4, fixed_abs, tag = 'smem constant byte address 0x4 - core index']
  #allocation1 [shape = 'u32[72,128]{1,0:T(1,128)}', space=vmem, size = 0x9000, scoped, tag = 'internal scratch']
  %s0 = inlined_call_operand.hbm [shape: f32[64,1024], index: 0, kind: input, shape index: {}]
  %s1 = inlined_call_operand.hbm [shape: f32[64,1024], index: 1, kind: output, shape index: {}]
  %s2 = sld [smem:[#allocation0]]
  $region41: #{tpu_custom_call.1} parent=0
    _
  %s4 = ssub.s32 1, %s2
  %s5 = scalar_select 0, %s4, %s2
  $region1: #{tpu_custom_call.1} parent=0
    #allocation2 [shape = 'u8[262144]{0}', space=vmem, size = 0x40000, scoped, tag = 'input window, operand 0']
    #allocation3 [shape = 's32[2]{0}', space=sflag, size = 0x8, scoped, tag = 'scoped memory for tpu_custom_call.1']
    #allocation4 [shape = 's32[2]{0}', space=sflag, size = 0x8, scoped, tag = 'scoped memory for tpu_custom_call.1']
    #allocation5 [shape = 'u8[262144]{0}', space=vmem, size = 0x40000, scoped, tag = 'output window, operand 0']
    %6 = vsyncpa [#allocation3], 0
    %s7 = scalar_lea.sflag [#allocation3], 1
    %8 = vsyncpa %s7, 0
    %9 = vsyncpa [#allocation4], 0
    %s10 = scalar_lea.sflag [#allocation4], 1
    %11 = vsyncpa %s10, 0
    loop: start=0, step=1, limit=4
    $region2: #{tpu_custom_call.1} parent=1 // loop_pre_header
      _
    $region3: #{tpu_custom_call.1} parent=1 // loop_header
      %s13 = sphi 0, %s17
      %p14 = scmp.ge.s32.totalorder %s13, 4
      %s23 = sphi 0, %s25
      %s26 = sphi 0, %s23
      %s27 = sphi 0, %s26
      %s43 = sphi 0, %s27
      %s49 = sphi 0, %s51
      %s52 = sphi 0, %s49
      %s53 = sphi 0, %s52
      %s69 = sphi 0, %s53
    $region4: #{tpu_custom_call.1} parent=1 // loop_header_branch
      %16 = sbr.rel (%p14) target = $region8
    $region5: #{tpu_custom_call.1} parent=1 // loop_body
      %s18 = ssub.s32 %s13, 1
      %s19 = ssub.s32 %s13, 2
      %s20 = sadd.s32 %s13, 1
      %s21 = ssub.s32 %s13, %s20
      %p22 = scmp.eq.s32.totalorder %s21, 0
      %s24 = sadd.s32 %s23, 1
      %s25 = scalar_select %p22, %s23, %s24
      %p28 = pneg %p22
      %p29 = scmp.eq.s32.totalorder %s13, 1
      %p30 = por %p28, %p29
      %p31 = scmp.ne.s32.totalorder %s23, %s26
      %p32 = scmp.eq.s32.totalorder %s13, 0
      %p33 = por %p31, %p32
      %p34 = scmp.ne.s32.totalorder %s23, %s26
      %p35 = scmp.eq.s32.totalorder %s18, 1
      %p36 = por %p34, %p35
      %p37 = scmp.ne.s32.totalorder %s26, %s27
      %p38 = scmp.eq.s32.totalorder %s18, 0
      %p39 = por %p37, %p38
      %p40 = scmp.ne.s32.totalorder %s26, %s27
      %p41 = scmp.eq.s32.totalorder %s19, 1
      %p42 = por %p40, %p41
      %p44 = scmp.ne.s32.totalorder %s27, %s43
      %p45 = scmp.eq.s32.totalorder %s19, 0
      %p46 = por %p44, %p45
      %s47 = ssub.s32 %s13, %s20
      %p48 = scmp.eq.s32.totalorder %s47, 0
      %s50 = sadd.s32 %s49, 1
      %s51 = scalar_select %p48, %s49, %s50
      %p54 = pneg %p48
      %p55 = scmp.eq.s32.totalorder %s13, 1
      %p56 = por %p54, %p55
      %p57 = scmp.ne.s32.totalorder %s49, %s52
      %p58 = scmp.eq.s32.totalorder %s13, 0
      %p59 = por %p57, %p58
      %p60 = scmp.ne.s32.totalorder %s49, %s52
      %p61 = scmp.eq.s32.totalorder %s18, 1
      %p62 = por %p60, %p61
      %p63 = scmp.ne.s32.totalorder %s52, %s53
      %p64 = scmp.eq.s32.totalorder %s18, 0
      %p65 = por %p63, %p64
      %p66 = scmp.ne.s32.totalorder %s52, %s53
      %p67 = scmp.eq.s32.totalorder %s19, 1
      %p68 = por %p66, %p67
      %p70 = scmp.ne.s32.totalorder %s53, %s69
      %p71 = scmp.eq.s32.totalorder %s19, 0
      %p72 = por %p70, %p71
      %p73 = scmp.le.s32.totalorder 1, %s13
      %p74 = scmp.lt.s32.totalorder %s13, 3
      %p75 = pnand %p73, %p74
      %p76 = pneg %p75
      // Predicated region
      $region9: #{tpu_custom_call.1} parent=5 // pred_check
        _
      $region10: #{tpu_custom_call.1} parent=5 // pred_check_branch
        %78 = sbr.rel (%p75) target = $region12
      $region11: #{tpu_custom_call.1} parent=5 // pred_region
        %s79 = ssub.s32 %s13, 1
      $region12: #{tpu_custom_call.1} parent=5 // pred_fallthru
        _
      %p80 = scmp.lt.s32.totalorder %s13, 2
      // Predicated region
      $region13: #{tpu_custom_call.1} parent=5 // pred_check
        %p81 = pneg %p80
      $region14: #{tpu_custom_call.1} parent=5 // pred_check_branch
        %83 = sbr.rel (%p81) target = $region16
      $region15: #{tpu_custom_call.1} parent=5 // pred_region
        // Predicated region
        $region17: #{tpu_custom_call.1} parent=15 // pred_check
          %p84 = pneg %p33
        $region18: #{tpu_custom_call.1} parent=15 // pred_check_branch
          %86 = sbr.rel (%p84) target = $region20
        $region19: #{tpu_custom_call.1} parent=15 // pred_region
          %s87 = sand.u32 %s23, 1
          %s88 = scalar_lea.sflag [#allocation3], %s87
          %s89 = sand.u32 %s23, 1
          %s90 = smul.addr %s89, 256
          %s91 = scalar_lea.vmem [#allocation2], %s90
          %s92 = smul.u32 4, %s13
          %94 = vsyncadd %s88, 0
          %s95 = smul.addr %s92, 8
          %s96 = smul.addr %s95, 8
          %s97 = scalar_lea.hbm %s0, %s96
          %s98 = sshll.u32 %s97, 4
          %s99 = int_to_ptr.hbm [resolvable:$true] %s98
          %s100 = sshll.u32 %s91, 4
          %s101 = int_to_ptr.vmem [resolvable:$true] %s100
          %106 = dma.hbm_to_vmem [thread:$0]  %s99, 4096, %s101, %s88, 1024, 1024, 64
        $region20: #{tpu_custom_call.1} parent=15 // pred_fallthru
          _
      $region16: #{tpu_custom_call.1} parent=5 // pred_fallthru
        _
      %p107 = scmp.le.s32.totalorder 1, %s13
      %p108 = scmp.lt.s32.totalorder %s13, 3
      %p109 = pnand %p107, %p108
      %p110 = pneg %p109
      // Predicated region
      $region21: #{tpu_custom_call.1} parent=5 // pred_check
        _
      $region22: #{tpu_custom_call.1} parent=5 // pred_check_branch
        %112 = sbr.rel (%p109) target = $region24
      $region23: #{tpu_custom_call.1} parent=5 // pred_region
        %s113 = ssub.s32 %s13, 1
        %s114 = sand.u32 %s26, 1
        %s115 = scalar_lea.sflag [#allocation3], %s114
        %s116 = sand.u32 %s26, 1
        %s117 = smul.addr %s116, 256
        %s118 = scalar_lea.vmem [#allocation2], %s117
        // Predicated region
        $region25: #{tpu_custom_call.1} parent=23 // pred_check
          %p119 = pneg %p39
        $region26: #{tpu_custom_call.1} parent=23 // pred_check_branch
          %121 = sbr.rel (%p119) target = $region28
        $region27: #{tpu_custom_call.1} parent=23 // pred_region
          %123 = dma.done %s115, 4096
        $region28: #{tpu_custom_call.1} parent=23 // pred_fallthru
          _
        %s124 = sand.u32 %s26, 1
        %s125 = scalar_lea.sflag [#allocation3], %s124
        %s126 = sand.u32 %s26, 1
        %s127 = smul.addr %s126, 256
        %s128 = scalar_lea.vmem [#allocation2], %s127
        %p129 = pneg %p39
        %p130 = pneg %p36
        %p131 = pneg %p65
        %p132 = pneg %p62
        %s133 = sand.u32 %s52, 1
        %s134 = scalar_lea.sflag [#allocation4], %s133
        %s135 = sand.u32 %s52, 1
        %s136 = smul.addr %s135, 256
        %s137 = scalar_lea.vmem [#allocation5], %s136
        %s138 = smul.u32 4, %s18
        %s139 = smul.u32 4, %s18
        %v140 = vld [vmem:[%s118] sm:$0xff]
        %v141 = vld [vmem:[%s118 + $0x8] sm:$0xff]
        %v142 = vld [vmem:[%s118 + $0x10] sm:$0xff]
        %v143 = vld [vmem:[%s118 + $0x18] sm:$0xff]
        %v144 = vld [vmem:[%s118 + $0x20] sm:$0xff]
        %v145 = vld [vmem:[%s118 + $0x28] sm:$0xff]
        %v146 = vld [vmem:[%s118 + $0x30] sm:$0xff]
        %v147 = vld [vmem:[%s118 + $0x38] sm:$0xff]
        %v148 = vld [vmem:[%s118 + $0x40] sm:$0xff]
        %v149 = vld [vmem:[%s118 + $0x48] sm:$0xff]
        %v150 = vld [vmem:[%s118 + $0x50] sm:$0xff]
        %v151 = vld [vmem:[%s118 + $0x58] sm:$0xff]
        %v152 = vld [vmem:[%s118 + $0x60] sm:$0xff]
        %v153 = vld [vmem:[%s118 + $0x68] sm:$0xff]
        %v154 = vld [vmem:[%s118 + $0x70] sm:$0xff]
        %v155 = vld [vmem:[%s118 + $0x78] sm:$0xff]
        %v156 = vld [vmem:[%s118 + $0x80] sm:$0xff]
        %v157 = vld [vmem:[%s118 + $0x88] sm:$0xff]
        %v158 = vld [vmem:[%s118 + $0x90] sm:$0xff]
        %v159 = vld [vmem:[%s118 + $0x98] sm:$0xff]
        %v160 = vld [vmem:[%s118 + $0xa0] sm:$0xff]
        %v161 = vld [vmem:[%s118 + $0xa8] sm:$0xff]
        %v162 = vld [vmem:[%s118 + $0xb0] sm:$0xff]
        %v163 = vld [vmem:[%s118 + $0xb8] sm:$0xff]
        %v164 = vld [vmem:[%s118 + $0xc0] sm:$0xff]
        %v165 = vld [vmem:[%s118 + $0xc8] sm:$0xff]
        %v166 = vld [vmem:[%s118 + $0xd0] sm:$0xff]
        %v167 = vld [vmem:[%s118 + $0xd8] sm:$0xff]
        %v168 = vld [vmem:[%s118 + $0xe0] sm:$0xff]
        %v169 = vld [vmem:[%s118 + $0xe8] sm:$0xff]
        %v170 = vld [vmem:[%s118 + $0xf0] sm:$0xff]
        %v171 = vld [vmem:[%s118 + $0xf8] sm:$0xff]
        %v172 = vmul.f32 %v140, -2.0
        %v173 = vmul.f32 %v141, -2.0
        %v174 = vmul.f32 %v142, -2.0
        %v175 = vmul.f32 %v143, -2.0
        %v176 = vmul.f32 %v144, -2.0
        %v177 = vmul.f32 %v145, -2.0
        %v178 = vmul.f32 %v146, -2.0
        %v179 = vmul.f32 %v147, -2.0
        %v180 = vmul.f32 %v148, -2.0
        %v181 = vmul.f32 %v149, -2.0
        %v182 = vmul.f32 %v150, -2.0
        %v183 = vmul.f32 %v151, -2.0
        %v184 = vmul.f32 %v152, -2.0
        %v185 = vmul.f32 %v153, -2.0
        %v186 = vmul.f32 %v154, -2.0
        %v187 = vmul.f32 %v155, -2.0
        %v188 = vmul.f32 %v156, -2.0
        %v189 = vmul.f32 %v157, -2.0
        %v190 = vmul.f32 %v158, -2.0
        %v191 = vmul.f32 %v159, -2.0
        %v192 = vmul.f32 %v160, -2.0
        %v193 = vmul.f32 %v161, -2.0
        %v194 = vmul.f32 %v162, -2.0
        %v195 = vmul.f32 %v163, -2.0
        %v196 = vmul.f32 %v164, -2.0
        %v197 = vmul.f32 %v165, -2.0
        %v198 = vmul.f32 %v166, -2.0
        %v199 = vmul.f32 %v167, -2.0
        %v200 = vmul.f32 %v168, -2.0
        %v201 = vmul.f32 %v169, -2.0
        %v202 = vmul.f32 %v170, -2.0
        %v203 = vmul.f32 %v171, -2.0
        %v204 = vmul.f32 %v172, 1.442695
        %v205 = vpow.pop %v204
        %v206 = vmul.f32 %v173, 1.442695
        %v207 = vpow.pop %v206
        %v208 = vmul.f32 %v174, 1.442695
        %v209 = vpow.pop %v208
        %v210 = vmul.f32 %v175, 1.442695
        %v211 = vpow.pop %v210
        %v212 = vmul.f32 %v176, 1.442695
        %v213 = vpow.pop %v212
        %v214 = vmul.f32 %v177, 1.442695
        %v215 = vpow.pop %v214
        %v216 = vmul.f32 %v178, 1.442695
        %v217 = vpow.pop %v216
        %v218 = vmul.f32 %v179, 1.442695
        %v219 = vpow.pop %v218
        %v220 = vmul.f32 %v180, 1.442695
        %v221 = vpow.pop %v220
        %v222 = vmul.f32 %v181, 1.442695
        %v223 = vpow.pop %v222
        %v224 = vmul.f32 %v182, 1.442695
        %v225 = vpow.pop %v224
        %v226 = vmul.f32 %v183, 1.442695
        %v227 = vpow.pop %v226
        %v228 = vmul.f32 %v184, 1.442695
        %v229 = vpow.pop %v228
        %v230 = vmul.f32 %v185, 1.442695
        %v231 = vpow.pop %v230
        %v232 = vmul.f32 %v186, 1.442695
        %v233 = vpow.pop %v232
        %v234 = vmul.f32 %v187, 1.442695
        %v235 = vpow.pop %v234
        %v236 = vmul.f32 %v188, 1.442695
        %v237 = vpow.pop %v236
        %v238 = vmul.f32 %v189, 1.442695
        %v239 = vpow.pop %v238
        %v240 = vmul.f32 %v190, 1.442695
        %v241 = vpow.pop %v240
        %v242 = vmul.f32 %v191, 1.442695
        %v243 = vpow.pop %v242
        %v244 = vmul.f32 %v192, 1.442695
        %v245 = vpow.pop %v244
        %v246 = vmul.f32 %v193, 1.442695
        %v247 = vpow.pop %v246
        %v248 = vmul.f32 %v194, 1.442695
        %v249 = vpow.pop %v248
        %v250 = vmul.f32 %v195, 1.442695
        %v251 = vpow.pop %v250
        %v252 = vmul.f32 %v196, 1.442695
        %v253 = vpow.pop %v252
        %v254 = vmul.f32 %v197, 1.442695
        %v255 = vpow.pop %v254
        %v256 = vmul.f32 %v198, 1.442695
        %v257 = vpow.pop %v256
        %v258 = vmul.f32 %v199, 1.442695
        %v259 = vpow.pop %v258
        %v260 = vmul.f32 %v200, 1.442695
        %v261 = vpow.pop %v260
        %v262 = vmul.f32 %v201, 1.442695
        %v263 = vpow.pop %v262
        %v264 = vmul.f32 %v202, 1.442695
        %v265 = vpow.pop %v264
        %v266 = vmul.f32 %v203, 1.442695
        %v267 = vpow.pop %v266
        %v268 = vadd.f32 %v205, 1.0
        %v269 = vadd.f32 %v207, 1.0
        %v270 = vadd.f32 %v209, 1.0
        %v271 = vadd.f32 %v211, 1.0
        %v272 = vadd.f32 %v213, 1.0
        %v273 = vadd.f32 %v215, 1.0
        %v274 = vadd.f32 %v217, 1.0
        %v275 = vadd.f32 %v219, 1.0
        %v276 = vadd.f32 %v221, 1.0
        %v277 = vadd.f32 %v223, 1.0
        %v278 = vadd.f32 %v225, 1.0
        %v279 = vadd.f32 %v227, 1.0
        %v280 = vadd.f32 %v229, 1.0
        %v281 = vadd.f32 %v231, 1.0
        %v282 = vadd.f32 %v233, 1.0
        %v283 = vadd.f32 %v235, 1.0
        %v284 = vadd.f32 %v237, 1.0
        %v285 = vadd.f32 %v239, 1.0
        %v286 = vadd.f32 %v241, 1.0
        %v287 = vadd.f32 %v243, 1.0
        %v288 = vadd.f32 %v245, 1.0
        %v289 = vadd.f32 %v247, 1.0
        %v290 = vadd.f32 %v249, 1.0
        %v291 = vadd.f32 %v251, 1.0
        %v292 = vadd.f32 %v253, 1.0
        %v293 = vadd.f32 %v255, 1.0
        %v294 = vadd.f32 %v257, 1.0
        %v295 = vadd.f32 %v259, 1.0
        %v296 = vadd.f32 %v261, 1.0
        %v297 = vadd.f32 %v263, 1.0
        %v298 = vadd.f32 %v265, 1.0
        %v299 = vadd.f32 %v267, 1.0
        %v300 = vrcp.pop %v268
        %v301 = vmul.f32 %v268, %v300
        %v302 = vsub.f32 1.0, %v301
        %v303 = vmul.f32 %v300, %v302
        %v304 = vadd.f32 %v300, %v303
        %vm305 = vweird.f32 %v268
        %vm306 = vweird.f32 %v300
        %vm307 = vmor %vm305, %vm306
        %v308 = vsel %vm307, %v300, %v304
        %v309 = vand.u32 2147483647, %v268
        %vm310 = vcmp.eq.f32.partialorder %v309, 8.507059e+37
        %v311 = vand.u32 %v268, 2147483648
        %v312 = vor.u32 1.1754944e-38, %v311
        %v313 = vsel %vm310, %v312, %v308
        %v314 = vmul.f32 1.0, %v313
        %v315 = vrcp.pop %v269
        %v316 = vmul.f32 %v269, %v315
        %v317 = vsub.f32 1.0, %v316
        %v318 = vmul.f32 %v315, %v317
        %v319 = vadd.f32 %v315, %v318
        %vm320 = vweird.f32 %v269
        %vm321 = vweird.f32 %v315
        %vm322 = vmor %vm320, %vm321
        %v323 = vsel %vm322, %v315, %v319
        %v324 = vand.u32 2147483647, %v269
        %vm325 = vcmp.eq.f32.partialorder %v324, 8.507059e+37
        %v326 = vand.u32 %v269, 2147483648
        %v327 = vor.u32 1.1754944e-38, %v326
        %v328 = vsel %vm325, %v327, %v323
        %v329 = vmul.f32 1.0, %v328
        %v330 = vrcp.pop %v270
        %v331 = vmul.f32 %v270, %v330
        %v332 = vsub.f32 1.0, %v331
        %v333 = vmul.f32 %v330, %v332
        %v334 = vadd.f32 %v330, %v333
        %vm335 = vweird.f32 %v270
        %vm336 = vweird.f32 %v330
        %vm337 = vmor %vm335, %vm336
        %v338 = vsel %vm337, %v330, %v334
        %v339 = vand.u32 2147483647, %v270
        %vm340 = vcmp.eq.f32.partialorder %v339, 8.507059e+37
        %v341 = vand.u32 %v270, 2147483648
        %v342 = vor.u32 1.1754944e-38, %v341
        %v343 = vsel %vm340, %v342, %v338
        %v344 = vmul.f32 1.0, %v343
        %v345 = vrcp.pop %v271
        %v346 = vmul.f32 %v271, %v345
        %v347 = vsub.f32 1.0, %v346
        %v348 = vmul.f32 %v345, %v347
        %v349 = vadd.f32 %v345, %v348
        %vm350 = vweird.f32 %v271
        %vm351 = vweird.f32 %v345
        %vm352 = vmor %vm350, %vm351
        %v353 = vsel %vm352, %v345, %v349
        %v354 = vand.u32 2147483647, %v271
        %vm355 = vcmp.eq.f32.partialorder %v354, 8.507059e+37
        %v356 = vand.u32 %v271, 2147483648
        %v357 = vor.u32 1.1754944e-38, %v356
        %v358 = vsel %vm355, %v357, %v353
        %v359 = vmul.f32 1.0, %v358
        %v360 = vrcp.pop %v272
        %v361 = vmul.f32 %v272, %v360
        %v362 = vsub.f32 1.0, %v361
        %v363 = vmul.f32 %v360, %v362
        %v364 = vadd.f32 %v360, %v363
        %vm365 = vweird.f32 %v272
        %vm366 = vweird.f32 %v360
        %vm367 = vmor %vm365, %vm366
        %v368 = vsel %vm367, %v360, %v364
        %v369 = vand.u32 2147483647, %v272
        %vm370 = vcmp.eq.f32.partialorder %v369, 8.507059e+37
        %v371 = vand.u32 %v272, 2147483648
        %v372 = vor.u32 1.1754944e-38, %v371
        %v373 = vsel %vm370, %v372, %v368
        %v374 = vmul.f32 1.0, %v373
        %v375 = vrcp.pop %v273
        %v376 = vmul.f32 %v273, %v375
        %v377 = vsub.f32 1.0, %v376
        %v378 = vmul.f32 %v375, %v377
        %v379 = vadd.f32 %v375, %v378
        %vm380 = vweird.f32 %v273
        %vm381 = vweird.f32 %v375
        %vm382 = vmor %vm380, %vm381
        %v383 = vsel %vm382, %v375, %v379
        %v384 = vand.u32 2147483647, %v273
        %vm385 = vcmp.eq.f32.partialorder %v384, 8.507059e+37
        %v386 = vand.u32 %v273, 2147483648
        %v387 = vor.u32 1.1754944e-38, %v386
        %v388 = vsel %vm385, %v387, %v383
        %v389 = vmul.f32 1.0, %v388
        %v390 = vrcp.pop %v274
        %v391 = vmul.f32 %v274, %v390
        %v392 = vsub.f32 1.0, %v391
        %v393 = vmul.f32 %v390, %v392
        %v394 = vadd.f32 %v390, %v393
        %vm395 = vweird.f32 %v274
        %vm396 = vweird.f32 %v390
        %vm397 = vmor %vm395, %vm396
        %v398 = vsel %vm397, %v390, %v394
        %v399 = vand.u32 2147483647, %v274
        %vm400 = vcmp.eq.f32.partialorder %v399, 8.507059e+37
        %v401 = vand.u32 %v274, 2147483648
        %v402 = vor.u32 1.1754944e-38, %v401
        %v403 = vsel %vm400, %v402, %v398
        %v404 = vmul.f32 1.0, %v403
        %v405 = vrcp.pop %v275
        %v406 = vmul.f32 %v275, %v405
        %v407 = vsub.f32 1.0, %v406
        %v408 = vmul.f32 %v405, %v407
        %v409 = vadd.f32 %v405, %v408
        %vm410 = vweird.f32 %v275
        %vm411 = vweird.f32 %v405
        %vm412 = vmor %vm410, %vm411
        %v413 = vsel %vm412, %v405, %v409
        %v414 = vand.u32 2147483647, %v275
        %vm415 = vcmp.eq.f32.partialorder %v414, 8.507059e+37
        %v416 = vand.u32 %v275, 2147483648
        %v417 = vor.u32 1.1754944e-38, %v416
        %v418 = vsel %vm415, %v417, %v413
        %v419 = vmul.f32 1.0, %v418
        %v420 = vrcp.pop %v276
        %v421 = vmul.f32 %v276, %v420
        %v422 = vsub.f32 1.0, %v421
        %v423 = vmul.f32 %v420, %v422
        %v424 = vadd.f32 %v420, %v423
        %vm425 = vweird.f32 %v276
        %vm426 = vweird.f32 %v420
        %vm427 = vmor %vm425, %vm426
        %v428 = vsel %vm427, %v420, %v424
        %v429 = vand.u32 2147483647, %v276
        %vm430 = vcmp.eq.f32.partialorder %v429, 8.507059e+37
        %v431 = vand.u32 %v276, 2147483648
        %v432 = vor.u32 1.1754944e-38, %v431
        %v433 = vsel %vm430, %v432, %v428
        %v434 = vmul.f32 1.0, %v433
        %v435 = vrcp.pop %v277
        %v436 = vmul.f32 %v277, %v435
        %v437 = vsub.f32 1.0, %v436
        %v438 = vmul.f32 %v435, %v437
        %v439 = vadd.f32 %v435, %v438
        %vm440 = vweird.f32 %v277
        %vm441 = vweird.f32 %v435
        %vm442 = vmor %vm440, %vm441
        %v443 = vsel %vm442, %v435, %v439
        %v444 = vand.u32 2147483647, %v277
        %vm445 = vcmp.eq.f32.partialorder %v444, 8.507059e+37
        %v446 = vand.u32 %v277, 2147483648
        %v447 = vor.u32 1.1754944e-38, %v446
        %v448 = vsel %vm445, %v447, %v443
        %v449 = vmul.f32 1.0, %v448
        %v450 = vrcp.pop %v278
        %v451 = vmul.f32 %v278, %v450
        %v452 = vsub.f32 1.0, %v451
        %v453 = vmul.f32 %v450, %v452
        %v454 = vadd.f32 %v450, %v453
        %vm455 = vweird.f32 %v278
        %vm456 = vweird.f32 %v450
        %vm457 = vmor %vm455, %vm456
        %v458 = vsel %vm457, %v450, %v454
        %v459 = vand.u32 2147483647, %v278
        %vm460 = vcmp.eq.f32.partialorder %v459, 8.507059e+37
        %v461 = vand.u32 %v278, 2147483648
        %v462 = vor.u32 1.1754944e-38, %v461
        %v463 = vsel %vm460, %v462, %v458
        %v464 = vmul.f32 1.0, %v463
        %v465 = vrcp.pop %v279
        %v466 = vmul.f32 %v279, %v465
        %v467 = vsub.f32 1.0, %v466
        %v468 = vmul.f32 %v465, %v467
        %v469 = vadd.f32 %v465, %v468
        %vm470 = vweird.f32 %v279
        %vm471 = vweird.f32 %v465
        %vm472 = vmor %vm470, %vm471
        %v473 = vsel %vm472, %v465, %v469
        %v474 = vand.u32 2147483647, %v279
        %vm475 = vcmp.eq.f32.partialorder %v474, 8.507059e+37
        %v476 = vand.u32 %v279, 2147483648
        %v477 = vor.u32 1.1754944e-38, %v476
        %v478 = vsel %vm475, %v477, %v473
        %v479 = vmul.f32 1.0, %v478
        %v480 = vrcp.pop %v280
        %v481 = vmul.f32 %v280, %v480
        %v482 = vsub.f32 1.0, %v481
        %v483 = vmul.f32 %v480, %v482
        %v484 = vadd.f32 %v480, %v483
        %vm485 = vweird.f32 %v280
        %vm486 = vweird.f32 %v480
        %vm487 = vmor %vm485, %vm486
        %v488 = vsel %vm487, %v480, %v484
        %v489 = vand.u32 2147483647, %v280
        %vm490 = vcmp.eq.f32.partialorder %v489, 8.507059e+37
        %v491 = vand.u32 %v280, 2147483648
        %v492 = vor.u32 1.1754944e-38, %v491
        %v493 = vsel %vm490, %v492, %v488
        %v494 = vmul.f32 1.0, %v493
        %v495 = vrcp.pop %v281
        %v496 = vmul.f32 %v281, %v495
        %v497 = vsub.f32 1.0, %v496
        %v498 = vmul.f32 %v495, %v497
        %v499 = vadd.f32 %v495, %v498
        %vm500 = vweird.f32 %v281
        %vm501 = vweird.f32 %v495
        %vm502 = vmor %vm500, %vm501
        %v503 = vsel %vm502, %v495, %v499
        %v504 = vand.u32 2147483647, %v281
        %vm505 = vcmp.eq.f32.partialorder %v504, 8.507059e+37
        %v506 = vand.u32 %v281, 2147483648
        %v507 = vor.u32 1.1754944e-38, %v506
        %v508 = vsel %vm505, %v507, %v503
        %v509 = vmul.f32 1.0, %v508
        %v510 = vrcp.pop %v282
        %v511 = vmul.f32 %v282, %v510
        %v512 = vsub.f32 1.0, %v511
        %v513 = vmul.f32 %v510, %v512
        %v514 = vadd.f32 %v510, %v513
        %vm515 = vweird.f32 %v282
        %vm516 = vweird.f32 %v510
        %vm517 = vmor %vm515, %vm516
        %v518 = vsel %vm517, %v510, %v514
        %v519 = vand.u32 2147483647, %v282
        %vm520 = vcmp.eq.f32.partialorder %v519, 8.507059e+37
        %v521 = vand.u32 %v282, 2147483648
        %v522 = vor.u32 1.1754944e-38, %v521
        %v523 = vsel %vm520, %v522, %v518
        %v524 = vmul.f32 1.0, %v523
        %v525 = vrcp.pop %v283
        %v526 = vmul.f32 %v283, %v525
        %v527 = vsub.f32 1.0, %v526
        %v528 = vmul.f32 %v525, %v527
        %v529 = vadd.f32 %v525, %v528
        %vm530 = vweird.f32 %v283
        %vm531 = vweird.f32 %v525
        %vm532 = vmor %vm530, %vm531
        %v533 = vsel %vm532, %v525, %v529
        %v534 = vand.u32 2147483647, %v283
        %vm535 = vcmp.eq.f32.partialorder %v534, 8.507059e+37
        %v536 = vand.u32 %v283, 2147483648
        %v537 = vor.u32 1.1754944e-38, %v536
        %v538 = vsel %vm535, %v537, %v533
        %v539 = vmul.f32 1.0, %v538
        %v540 = vrcp.pop %v284
        %v541 = vmul.f32 %v284, %v540
        %v542 = vsub.f32 1.0, %v541
        %v543 = vmul.f32 %v540, %v542
        %v544 = vadd.f32 %v540, %v543
        %vm545 = vweird.f32 %v284
        %vm546 = vweird.f32 %v540
        %vm547 = vmor %vm545, %vm546
        %v548 = vsel %vm547, %v540, %v544
        %v549 = vand.u32 2147483647, %v284
        %vm550 = vcmp.eq.f32.partialorder %v549, 8.507059e+37
        %v551 = vand.u32 %v284, 2147483648
        %v552 = vor.u32 1.1754944e-38, %v551
        %v553 = vsel %vm550, %v552, %v548
        %v554 = vmul.f32 1.0, %v553
        %v555 = vrcp.pop %v285
        %v556 = vmul.f32 %v285, %v555
        %v557 = vsub.f32 1.0, %v556
        %v558 = vmul.f32 %v555, %v557
        %v559 = vadd.f32 %v555, %v558
        %vm560 = vweird.f32 %v285
        %vm561 = vweird.f32 %v555
        %vm562 = vmor %vm560, %vm561
        %v563 = vsel %vm562, %v555, %v559
        %v564 = vand.u32 2147483647, %v285
        %vm565 = vcmp.eq.f32.partialorder %v564, 8.507059e+37
        %v566 = vand.u32 %v285, 2147483648
        %v567 = vor.u32 1.1754944e-38, %v566
        %v568 = vsel %vm565, %v567, %v563
        %v569 = vmul.f32 1.0, %v568
        %v570 = vrcp.pop %v286
        %v571 = vmul.f32 %v286, %v570
        %v572 = vsub.f32 1.0, %v571
        %v573 = vmul.f32 %v570, %v572
        %v574 = vadd.f32 %v570, %v573
        %vm575 = vweird.f32 %v286
        %vm576 = vweird.f32 %v570
        %vm577 = vmor %vm575, %vm576
        %v578 = vsel %vm577, %v570, %v574
        %v579 = vand.u32 2147483647, %v286
        %vm580 = vcmp.eq.f32.partialorder %v579, 8.507059e+37
        %v581 = vand.u32 %v286, 2147483648
        %v582 = vor.u32 1.1754944e-38, %v581
        %v583 = vsel %vm580, %v582, %v578
        %v584 = vmul.f32 1.0, %v583
        %v585 = vrcp.pop %v287
        %v586 = vmul.f32 %v287, %v585
        %v587 = vsub.f32 1.0, %v586
        %v588 = vmul.f32 %v585, %v587
        %v589 = vadd.f32 %v585, %v588
        %vm590 = vweird.f32 %v287
        %vm591 = vweird.f32 %v585
        %vm592 = vmor %vm590, %vm591
        %v593 = vsel %vm592, %v585, %v589
        %v594 = vand.u32 2147483647, %v287
        %vm595 = vcmp.eq.f32.partialorder %v594, 8.507059e+37
        %v596 = vand.u32 %v287, 2147483648
        %v597 = vor.u32 1.1754944e-38, %v596
        %v598 = vsel %vm595, %v597, %v593
        %v599 = vmul.f32 1.0, %v598
        %v600 = vrcp.pop %v288
        %v601 = vmul.f32 %v288, %v600
        %v602 = vsub.f32 1.0, %v601
        %v603 = vmul.f32 %v600, %v602
        %v604 = vadd.f32 %v600, %v603
        %vm605 = vweird.f32 %v288
        %vm606 = vweird.f32 %v600
        %vm607 = vmor %vm605, %vm606
        %v608 = vsel %vm607, %v600, %v604
        %v609 = vand.u32 2147483647, %v288
        %vm610 = vcmp.eq.f32.partialorder %v609, 8.507059e+37
        %v611 = vand.u32 %v288, 2147483648
        %v612 = vor.u32 1.1754944e-38, %v611
        %v613 = vsel %vm610, %v612, %v608
        %v614 = vmul.f32 1.0, %v613
        %v615 = vrcp.pop %v289
        %v616 = vmul.f32 %v289, %v615
        %v617 = vsub.f32 1.0, %v616
        %v618 = vmul.f32 %v615, %v617
        %v619 = vadd.f32 %v615, %v618
        %vm620 = vweird.f32 %v289
        %vm621 = vweird.f32 %v615
        %vm622 = vmor %vm620, %vm621
        %v623 = vsel %vm622, %v615, %v619
        %v624 = vand.u32 2147483647, %v289
        %vm625 = vcmp.eq.f32.partialorder %v624, 8.507059e+37
        %v626 = vand.u32 %v289, 2147483648
        %v627 = vor.u32 1.1754944e-38, %v626
        %v628 = vsel %vm625, %v627, %v623
        %v629 = vmul.f32 1.0, %v628
        %v630 = vrcp.pop %v290
        %v631 = vmul.f32 %v290, %v630
        %v632 = vsub.f32 1.0, %v631
        %v633 = vmul.f32 %v630, %v632
        %v634 = vadd.f32 %v630, %v633
        %vm635 = vweird.f32 %v290
        %vm636 = vweird.f32 %v630
        %vm637 = vmor %vm635, %vm636
        %v638 = vsel %vm637, %v630, %v634
        %v639 = vand.u32 2147483647, %v290
        %vm640 = vcmp.eq.f32.partialorder %v639, 8.507059e+37
        %v641 = vand.u32 %v290, 2147483648
        %v642 = vor.u32 1.1754944e-38, %v641
        %v643 = vsel %vm640, %v642, %v638
        %v644 = vmul.f32 1.0, %v643
        %v645 = vrcp.pop %v291
        %v646 = vmul.f32 %v291, %v645
        %v647 = vsub.f32 1.0, %v646
        %v648 = vmul.f32 %v645, %v647
        %v649 = vadd.f32 %v645, %v648
        %vm650 = vweird.f32 %v291
        %vm651 = vweird.f32 %v645
        %vm652 = vmor %vm650, %vm651
        %v653 = vsel %vm652, %v645, %v649
        %v654 = vand.u32 2147483647, %v291
        %vm655 = vcmp.eq.f32.partialorder %v654, 8.507059e+37
        %v656 = vand.u32 %v291, 2147483648
        %v657 = vor.u32 1.1754944e-38, %v656
        %v658 = vsel %vm655, %v657, %v653
        %v659 = vmul.f32 1.0, %v658
        %v660 = vrcp.pop %v292
        %v661 = vmul.f32 %v292, %v660
        %v662 = vsub.f32 1.0, %v661
        %v663 = vmul.f32 %v660, %v662
        %v664 = vadd.f32 %v660, %v663
        %vm665 = vweird.f32 %v292
        %vm666 = vweird.f32 %v660
        %vm667 = vmor %vm665, %vm666
        %v668 = vsel %vm667, %v660, %v664
        %v669 = vand.u32 2147483647, %v292
        %vm670 = vcmp.eq.f32.partialorder %v669, 8.507059e+37
        %v671 = vand.u32 %v292, 2147483648
        %v672 = vor.u32 1.1754944e-38, %v671
        %v673 = vsel %vm670, %v672, %v668
        %v674 = vmul.f32 1.0, %v673
        %v675 = vrcp.pop %v293
        %v676 = vmul.f32 %v293, %v675
        %v677 = vsub.f32 1.0, %v676
        %v678 = vmul.f32 %v675, %v677
        %v679 = vadd.f32 %v675, %v678
        %vm680 = vweird.f32 %v293
        %vm681 = vweird.f32 %v675
        %vm682 = vmor %vm680, %vm681
        %v683 = vsel %vm682, %v675, %v679
        %v684 = vand.u32 2147483647, %v293
        %vm685 = vcmp.eq.f32.partialorder %v684, 8.507059e+37
        %v686 = vand.u32 %v293, 2147483648
        %v687 = vor.u32 1.1754944e-38, %v686
        %v688 = vsel %vm685, %v687, %v683
        %v689 = vmul.f32 1.0, %v688
        %v690 = vrcp.pop %v294
        %v691 = vmul.f32 %v294, %v690
        %v692 = vsub.f32 1.0, %v691
        %v693 = vmul.f32 %v690, %v692
        %v694 = vadd.f32 %v690, %v693
        %vm695 = vweird.f32 %v294
        %vm696 = vweird.f32 %v690
        %vm697 = vmor %vm695, %vm696
        %v698 = vsel %vm697, %v690, %v694
        %v699 = vand.u32 2147483647, %v294
        %vm700 = vcmp.eq.f32.partialorder %v699, 8.507059e+37
        %v701 = vand.u32 %v294, 2147483648
        %v702 = vor.u32 1.1754944e-38, %v701
        %v703 = vsel %vm700, %v702, %v698
        %v704 = vmul.f32 1.0, %v703
        %v705 = vrcp.pop %v295
        %v706 = vmul.f32 %v295, %v705
        %v707 = vsub.f32 1.0, %v706
        %v708 = vmul.f32 %v705, %v707
        %v709 = vadd.f32 %v705, %v708
        %vm710 = vweird.f32 %v295
        %vm711 = vweird.f32 %v705
        %vm712 = vmor %vm710, %vm711
        %v713 = vsel %vm712, %v705, %v709
        %v714 = vand.u32 2147483647, %v295
        %vm715 = vcmp.eq.f32.partialorder %v714, 8.507059e+37
        %v716 = vand.u32 %v295, 2147483648
        %v717 = vor.u32 1.1754944e-38, %v716
        %v718 = vsel %vm715, %v717, %v713
        %v719 = vmul.f32 1.0, %v718
        %v720 = vrcp.pop %v296
        %v721 = vmul.f32 %v296, %v720
        %v722 = vsub.f32 1.0, %v721
        %v723 = vmul.f32 %v720, %v722
        %v724 = vadd.f32 %v720, %v723
        %vm725 = vweird.f32 %v296
        %vm726 = vweird.f32 %v720
        %vm727 = vmor %vm725, %vm726
        %v728 = vsel %vm727, %v720, %v724
        %v729 = vand.u32 2147483647, %v296
        %vm730 = vcmp.eq.f32.partialorder %v729, 8.507059e+37
        %v731 = vand.u32 %v296, 2147483648
        %v732 = vor.u32 1.1754944e-38, %v731
        %v733 = vsel %vm730, %v732, %v728
        %v734 = vmul.f32 1.0, %v733
        %v735 = vrcp.pop %v297
        %v736 = vmul.f32 %v297, %v735
        %v737 = vsub.f32 1.0, %v736
        %v738 = vmul.f32 %v735, %v737
        %v739 = vadd.f32 %v735, %v738
        %vm740 = vweird.f32 %v297
        %vm741 = vweird.f32 %v735
        %vm742 = vmor %vm740, %vm741
        %v743 = vsel %vm742, %v735, %v739
        %v744 = vand.u32 2147483647, %v297
        %vm745 = vcmp.eq.f32.partialorder %v744, 8.507059e+37
        %v746 = vand.u32 %v297, 2147483648
        %v747 = vor.u32 1.1754944e-38, %v746
        %v748 = vsel %vm745, %v747, %v743
        %v749 = vmul.f32 1.0, %v748
        %v750 = vrcp.pop %v298
        %v751 = vmul.f32 %v298, %v750
        %v752 = vsub.f32 1.0, %v751
        %v753 = vmul.f32 %v750, %v752
        %v754 = vadd.f32 %v750, %v753
        %vm755 = vweird.f32 %v298
        %vm756 = vweird.f32 %v750
        %vm757 = vmor %vm755, %vm756
        %v758 = vsel %vm757, %v750, %v754
        %v759 = vand.u32 2147483647, %v298
        %vm760 = vcmp.eq.f32.partialorder %v759, 8.507059e+37
        %v761 = vand.u32 %v298, 2147483648
        %v762 = vor.u32 1.1754944e-38, %v761
        %v763 = vsel %vm760, %v762, %v758
        %v764 = vmul.f32 1.0, %v763
        %v765 = vrcp.pop %v299
        %v766 = vmul.f32 %v299, %v765
        %v767 = vsub.f32 1.0, %v766
        %v768 = vmul.f32 %v765, %v767
        %v769 = vadd.f32 %v765, %v768
        %vm770 = vweird.f32 %v299
        %vm771 = vweird.f32 %v765
        %vm772 = vmor %vm770, %vm771
        %v773 = vsel %vm772, %v765, %v769
        %v774 = vand.u32 2147483647, %v299
        %vm775 = vcmp.eq.f32.partialorder %v774, 8.507059e+37
        %v776 = vand.u32 %v299, 2147483648
        %v777 = vor.u32 1.1754944e-38, %v776
        %v778 = vsel %vm775, %v777, %v773
        %v779 = vmul.f32 1.0, %v778
        %780 = vst [vmem:[%s137] sm:$0xff] %v314
        %781 = vst [vmem:[%s137 + $0x8] sm:$0xff] %v329
        %782 = vst [vmem:[%s137 + $0x10] sm:$0xff] %v344
        %783 = vst [vmem:[%s137 + $0x18] sm:$0xff] %v359
        %784 = vst [vmem:[%s137 + $0x20] sm:$0xff] %v374
        %785 = vst [vmem:[%s137 + $0x28] sm:$0xff] %v389
        %786 = vst [vmem:[%s137 + $0x30] sm:$0xff] %v404
        %787 = vst [vmem:[%s137 + $0x38] sm:$0xff] %v419
        %788 = vst [vmem:[%s137 + $0x40] sm:$0xff] %v434
        %789 = vst [vmem:[%s137 + $0x48] sm:$0xff] %v449
        %790 = vst [vmem:[%s137 + $0x50] sm:$0xff] %v464
        %791 = vst [vmem:[%s137 + $0x58] sm:$0xff] %v479
        %792 = vst [vmem:[%s137 + $0x60] sm:$0xff] %v494
        %793 = vst [vmem:[%s137 + $0x68] sm:$0xff] %v509
        %794 = vst [vmem:[%s137 + $0x70] sm:$0xff] %v524
        %795 = vst [vmem:[%s137 + $0x78] sm:$0xff] %v539
        %796 = vst [vmem:[%s137 + $0x80] sm:$0xff] %v554
        %797 = vst [vmem:[%s137 + $0x88] sm:$0xff] %v569
        %798 = vst [vmem:[%s137 + $0x90] sm:$0xff] %v584
        %799 = vst [vmem:[%s137 + $0x98] sm:$0xff] %v599
        %800 = vst [vmem:[%s137 + $0xa0] sm:$0xff] %v614
        %801 = vst [vmem:[%s137 + $0xa8] sm:$0xff] %v629
        %802 = vst [vmem:[%s137 + $0xb0] sm:$0xff] %v644
        %803 = vst [vmem:[%s137 + $0xb8] sm:$0xff] %v659
        %804 = vst [vmem:[%s137 + $0xc0] sm:$0xff] %v674
        %805 = vst [vmem:[%s137 + $0xc8] sm:$0xff] %v689
        %806 = vst [vmem:[%s137 + $0xd0] sm:$0xff] %v704
        %807 = vst [vmem:[%s137 + $0xd8] sm:$0xff] %v719
        %808 = vst [vmem:[%s137 + $0xe0] sm:$0xff] %v734
        %809 = vst [vmem:[%s137 + $0xe8] sm:$0xff] %v749
        %810 = vst [vmem:[%s137 + $0xf0] sm:$0xff] %v764
        %811 = vst [vmem:[%s137 + $0xf8] sm:$0xff] %v779
        %s812 = sand.u32 %s52, 1
        %s813 = scalar_lea.sflag [#allocation4], %s812
        %s814 = sand.u32 %s52, 1
        %s815 = smul.addr %s814, 256
        %s816 = scalar_lea.vmem [#allocation5], %s815
        // Predicated region
        $region29: #{tpu_custom_call.1} parent=23 // pred_check
          %p817 = pneg %p62
        $region30: #{tpu_custom_call.1} parent=23 // pred_check_branch
          %819 = sbr.rel (%p817) target = $region32
        $region31: #{tpu_custom_call.1} parent=23 // pred_region
          %s820 = smul.u32 4, %s18
          %822 = vsyncadd %s813, 0
          %s823 = smul.addr %s820, 8
          %s824 = smul.addr %s823, 8
          %s825 = scalar_lea.hbm %s1, %s824
          %s826 = sshll.u32 %s816, 4
          %s827 = int_to_ptr.vmem [resolvable:$true] %s826
          %s828 = sshll.u32 %s825, 4
          %s829 = int_to_ptr.hbm [resolvable:$true] %s828
          %834 = dma.vmem_to_hbm [thread:$0]  %s827, 4096, %s829, %s813, 1024, 1024, 64
        $region32: #{tpu_custom_call.1} parent=23 // pred_fallthru
          _
      $region24: #{tpu_custom_call.1} parent=5 // pred_fallthru
        _
      %p835 = scmp.le.s32.totalorder 2, %s13
      // Predicated region
      $region33: #{tpu_custom_call.1} parent=5 // pred_check
        %p836 = pneg %p835
      $region34: #{tpu_custom_call.1} parent=5 // pred_check_branch
        %838 = sbr.rel (%p836) target = $region36
      $region35: #{tpu_custom_call.1} parent=5 // pred_region
        %s839 = ssub.s32 %s13, 2
        // Predicated region
        $region37: #{tpu_custom_call.1} parent=35 // pred_check
          %p840 = pneg %p68
        $region38: #{tpu_custom_call.1} parent=35 // pred_check_branch
          %842 = sbr.rel (%p840) target = $region40
        $region39: #{tpu_custom_call.1} parent=35 // pred_region
          %s843 = sand.u32 %s53, 1
          %s844 = scalar_lea.sflag [#allocation4], %s843
          %s845 = sand.u32 %s53, 1
          %s846 = smul.addr %s845, 256
          %s847 = scalar_lea.vmem [#allocation5], %s846
          %849 = dma.done %s844, 4096
        $region40: #{tpu_custom_call.1} parent=35 // pred_fallthru
          _
      $region36: #{tpu_custom_call.1} parent=5 // pred_fallthru
        _
    $region6: #{tpu_custom_call.1} parent=1 // loop_footer
      %s17 = sadd.s32 1, %s13
    $region7: #{tpu_custom_call.1} parent=1 // loop_footer_branch
      %12 = sbr.rel target = $region3
    $region8: #{tpu_custom_call.1} parent=1 // loop_exit
      _
    %850 = vsyncpa [#allocation3], 1
    %s851 = scalar_lea.sflag [#allocation3], 1
    %852 = vsyncpa %s851, 1
    %853 = vsyncpa [#allocation4], 1
    %s854 = scalar_lea.sflag [#allocation4], 1
    %855 = vsyncpa %s854, 1

</llo_original>
